<compile_context>
chip_gen: v7x
topology: tpu7x:2x2x1
jax: 0.10.0
libtpu: 0.0.40
codegen_flags: <defaults>
</compile_context>

<pallas_src>
import functools
import numpy as np
import jax
import jax.numpy as jnp
from jax.experimental import pallas as pl
from jax.experimental.pallas import tpu as pltpu


# ----------------------------- config ---------------------------------------
class Config:
    dim_fts = [32]          # sum(dim_fts) = dim_ft = 32
    dim_embed = 32
    num_node_types = 4
    is_embed = True
    nonlinear = True        # ReLU
    norm = True             # l2norm over last dim
    dropout = 0.0           # eval mode -> identity


def gen_order_embeds(max_len, dim_ft):
    """Sinusoidal order embeddings (row 0 is all zeros), as in asg2cap."""
    order_embeds = np.zeros((max_len, dim_ft), dtype=np.float32)
    position = np.arange(0, max_len - 1, dtype=np.float32)[:, None]
    div_term = np.exp(np.arange(0, dim_ft, 2, dtype=np.float32)
                      * -(np.log(10000.0) / dim_ft))
    order_embeds[1:, 0::2] = np.sin(position * div_term)
    order_embeds[1:, 1::2] = np.cos(position * div_term)
    return order_embeds


def _round_up(x, m):
    return ((x + m - 1) // m) * m


# ----------------------------- Pallas kernel --------------------------------
def flat_encoder_kernel(num_node_types, fts_ref, idx_ref, tbl_ref, w_ref, b_ref,
                        out_ref):
    fts = fts_ref[...]                       # (TM, D) f32
    idx = idx_ref[...]                       # (TM, 2) int32: [:,0]=node_type, [:,1]=order
    tbl = tbl_ref[...]                       # (T, D) = concat(node_table, order_table)

    tm = fts.shape[0]
    t_total = tbl.shape[0]

    nt = idx[:, 0:1]                         # (TM, 1)
    oi = idx[:, 1:2]                         # (TM, 1)

    # Fused embedding lookup: one summed two-hot -> one MXU matmul gives
    # node_table[nt] + order_table[oi] directly.
    iota = jax.lax.broadcasted_iota(jnp.int32, (tm, t_total), 1)
    onehot = ((nt == iota).astype(jnp.float32)
              + ((oi + num_node_types) == iota).astype(jnp.float32))    # (TM, T)
    embeds = jnp.dot(onehot, tbl, preferred_element_type=jnp.float32)   # (TM, D)

    # inputs = fts * (node_embedding(node_types) + attr_order_embeds[attr_order_idxs])
    inputs = fts * embeds                                               # (TM, D)

    # Encoder: Linear -> ReLU -> l2norm -> (dropout == identity in eval).
    h = jnp.dot(inputs, w_ref[...],
                preferred_element_type=jnp.float32) + b_ref[...]        # (TM, E)
    h = jnp.maximum(h, 0.0)
    ssq = jnp.sum(h * h, axis=-1, keepdims=True)                        # (TM, 1)
    # max(ssq, 1e-20) + rsqrt == reference's max(sqrt(ssq), 1e-10) divide at the
    # clamp boundary; rsqrt runs on the EUP (free slot on a mem-bound kernel).
    out_ref[...] = h * jax.lax.rsqrt(jnp.maximum(ssq, 1e-20))


# ----------------------------- wrapper ---------------------------------------
def flat_encoder(fts, node_types, attr_order_idxs, params, cfg, tm=2048):
    B, S, D = fts.shape
    E = cfg.dim_embed
    N = B * S

    # Row tile: multiple of 8 sublanes.  Cap at ~N/4 so the "parallel" grid axis
    # keeps >= ~4 steps (v7x 2-TC sharding); cap at tm (2048 default keeps the
    # double-buffered VMEM blocks well under v5e's 16 MiB scoped default).
    tm_eff = max(8, min(tm, _round_up(pl.cdiv(N, 4), 8)))
    grid = (pl.cdiv(N, tm_eff),)             # ragged last block handled by Pallas

    # Inputs: row-major rows, feature dim on lanes.  No padding, no output slice.
    fts2d = fts.reshape(N, D).astype(jnp.float32)
    idx2d = jnp.stack([node_types.reshape(N), attr_order_idxs.reshape(N)],
                      axis=-1).astype(jnp.int32)                        # (N, 2)

    # Fused table + Linear params (kept resident in VMEM across grid steps).
    tbl = jnp.concatenate([params["node_table"], params["order_table"]],
                          axis=0).astype(jnp.float32)                   # (T, D)
    t_total = tbl.shape[0]
    w = params["w"].astype(jnp.float32)                                 # (D, E)
    b = params["b"].astype(jnp.float32)                                 # (1, E)

    cost = pl.CostEstimate(
        flops=int(2 * N * (t_total * D + D * E)),
        transcendentals=int(N),
        bytes_accessed=int(4 * N * (D + 2 + E)
                           + 4 * (t_total * D + D * E + E)),
    )

    out = pl.pallas_call(
        functools.partial(flat_encoder_kernel, cfg.num_node_types),
        out_shape=jax.ShapeDtypeStruct((N, E), jnp.float32),
        grid=grid,
        in_specs=[
            pl.BlockSpec((tm_eff, D), lambda i: (i, 0)),       # fts tile
            pl.BlockSpec((tm_eff, 2), lambda i: (i, 0)),       # packed (nt, oi) tile
            pl.BlockSpec((t_total, D), lambda i: (0, 0)),      # fused embedding table (resident)
            pl.BlockSpec((D, E), lambda i: (0, 0)),            # Linear weight (resident)
            pl.BlockSpec((1, E), lambda i: (0, 0)),            # Linear bias (resident)
        ],
        out_specs=pl.BlockSpec((tm_eff, E), lambda i: (i, 0)),
        compiler_params=pltpu.CompilerParams(
            dimension_semantics=("parallel",)),
        cost_estimate=cost,
    )(fts2d, idx2d, tbl, w, b)

    return out.reshape(B, S, E)


# ----------------------------- reference (pure JAX) ---------------------------
def flat_encoder_ref(fts, node_types, attr_order_idxs, params, cfg):
    node_e = params["node_table"][node_types]           # (B, S, D)
    order_e = params["order_table"][attr_order_idxs]    # (B, S, D)
    inputs = fts * (node_e + order_e)
    h = jnp.einsum("bsd,de->bse", inputs, params["w"]) + params["b"][0]
    h = jnp.maximum(h, 0.0)
    nrm = jnp.sqrt(jnp.sum(h * h, axis=-1, keepdims=True))
    return h / jnp.maximum(nrm, 1e-10)


# ----------------------------- main ------------------------------------------
if __name__ == "__main__":
    cfg = Config()
    D = sum(cfg.dim_fts)
    E = cfg.dim_embed
    B, S = 2, 8

    key = jax.random.PRNGKey(0)
    k_fts, k_nt, k_oi, k_w, k_b, k_tbl = jax.random.split(key, 6)

    # deterministic synthetic parameters (shapes from FlatEncoder.__init__)
    params = {
        "node_table": jax.random.normal(k_tbl, (cfg.num_node_types, D),
                                        dtype=jnp.float32) * 0.1,
        "order_table": jnp.asarray(gen_order_embeds(20, D)),
        "w": jax.random.normal(k_w, (D, E), dtype=jnp.float32) * 0.1,
        "b": (jax.random.normal(k_b, (1, E), dtype=jnp.float32) * 0.01),
    }

    # deterministic inputs
    fts = jax.random.normal(k_fts, (B, S, D), dtype=jnp.float32)
    node_types = jax.random.randint(k_nt, (B, S), 0, cfg.num_node_types,
                                    dtype=jnp.int32)
    attr_order_idxs = jax.random.randint(k_oi, (B, S), 0, 20, dtype=jnp.int32)

    out = flat_encoder(fts, node_types, attr_order_idxs, params, cfg)
    out = jax.block_until_ready(out)

    ref = flat_encoder_ref(fts, node_types, attr_order_idxs, params, cfg)
    np.testing.assert_allclose(np.asarray(out), np.asarray(ref),
                               rtol=1e-5, atol=1e-5)

    print("KERNEL_OK")
</pallas_src>

<mosaic_0001>
module attributes {stable_mosaic.version = 11 : i64} {
  func.func @flat_encoder_kernel(%arg0: i32, %arg1: memref<8x32xf32, #tpu.memory_space<vmem>>, %arg2: memref<8x2xi32, #tpu.memory_space<vmem>>, %arg3: memref<24x32xf32, #tpu.memory_space<vmem>>, %arg4: memref<32x32xf32, #tpu.memory_space<vmem>>, %arg5: memref<1x32xf32, #tpu.memory_space<vmem>>, %arg6: memref<8x32xf32, #tpu.memory_space<vmem>>) attributes {dimension_semantics = [#tpu.dimension_semantics<parallel>], iteration_bounds = array<i64: 2>, scalar_prefetch = 0 : i64, scratch_operands = 0 : i64, tpu.core_type = #tpu.core_type<tc>, window_params = [{transform_indices = @transform_0, window_bounds = array<i64: 8, 32>}, {transform_indices = @transform_1, window_bounds = array<i64: 8, 2>}, {pipeline_mode = #tpu.pipeline_mode<synchronous>, transform_indices = @transform_2, window_bounds = array<i64: 24, 32>}, {pipeline_mode = #tpu.pipeline_mode<synchronous>, transform_indices = @transform_3, window_bounds = array<i64: 32, 32>}, {pipeline_mode = #tpu.pipeline_mode<synchronous>, transform_indices = @transform_4, window_bounds = array<i64: 1, 32>}, {transform_indices = @transform_5, window_bounds = array<i64: 8, 32>}]} {
    %c0 = arith.constant 0 : index
    %c0_0 = arith.constant 0 : index
    %0 = vector.load %arg1[%c0, %c0_0] : memref<8x32xf32, #tpu.memory_space<vmem>>, vector<8x32xf32>
    %c0_1 = arith.constant 0 : index
    %c0_2 = arith.constant 0 : index
    %1 = vector.load %arg2[%c0_1, %c0_2] : memref<8x2xi32, #tpu.memory_space<vmem>>, vector<8x2xi32>
    %c0_3 = arith.constant 0 : index
    %c0_4 = arith.constant 0 : index
    %2 = vector.load %arg3[%c0_3, %c0_4] : memref<24x32xf32, #tpu.memory_space<vmem>>, vector<24x32xf32>
    %3 = vector.extract_strided_slice %1 {offsets = [0, 0], sizes = [8, 1], strides = [1, 1]} : vector<8x2xi32> to vector<8x1xi32>
    %4 = vector.extract_strided_slice %1 {offsets = [0, 1], sizes = [8, 1], strides = [1, 1]} : vector<8x2xi32> to vector<8x1xi32>
    %5 = tpu.iota {dimensions = array<i32: 1>} : vector<8x24xi32>
    %6 = vector.broadcast %3 : vector<8x1xi32> to vector<8x24xi32>
    %7 = arith.cmpi eq, %6, %5 : vector<8x24xi32>
    %8 = arith.extui %7 : vector<8x24xi1> to vector<8x24xi32>
    %9 = arith.sitofp %8 : vector<8x24xi32> to vector<8x24xf32>
    %c4_i32 = arith.constant 4 : i32
    %10 = vector.broadcast %c4_i32 : i32 to vector<8x1xi32>
    %11 = arith.addi %4, %10 : vector<8x1xi32>
    %12 = vector.broadcast %11 : vector<8x1xi32> to vector<8x24xi32>
    %13 = arith.cmpi eq, %12, %5 : vector<8x24xi32>
    %14 = arith.extui %13 : vector<8x24xi1> to vector<8x24xi32>
    %15 = arith.sitofp %14 : vector<8x24xi32> to vector<8x24xf32>
    %16 = arith.addf %9, %15 : vector<8x24xf32>
    %cst = arith.constant dense<0.000000e+00> : vector<8x32xf32>
    %17 = tpu.matmul %16, %2, %cst {dimension_numbers = #tpu.dot_dimension_numbers<[1], [0], [0], [1], [0, 0, 1, 1], [], []>} : vector<8x24xf32>, vector<24x32xf32>, vector<8x32xf32> -> vector<8x32xf32>
    %18 = arith.mulf %0, %17 : vector<8x32xf32>
    %c0_5 = arith.constant 0 : index
    %c0_6 = arith.constant 0 : index
    %19 = vector.load %arg4[%c0_5, %c0_6] : memref<32x32xf32, #tpu.memory_space<vmem>>, vector<32x32xf32>
    %cst_7 = arith.constant dense<0.000000e+00> : vector<8x32xf32>
    %20 = tpu.matmul %18, %19, %cst_7 {dimension_numbers = #tpu.dot_dimension_numbers<[1], [0], [0], [1], [0, 0, 1, 1], [], []>} : vector<8x32xf32>, vector<32x32xf32>, vector<8x32xf32> -> vector<8x32xf32>
    %c0_8 = arith.constant 0 : index
    %c0_9 = arith.constant 0 : index
    %21 = vector.load %arg5[%c0_8, %c0_9] : memref<1x32xf32, #tpu.memory_space<vmem>>, vector<1x32xf32>
    %22 = vector.broadcast %21 : vector<1x32xf32> to vector<8x32xf32>
    %23 = arith.addf %20, %22 : vector<8x32xf32>
    %cst_10 = arith.constant 0.000000e+00 : f32
    %24 = vector.broadcast %cst_10 : f32 to vector<8x32xf32>
    %25 = arith.maximumf %23, %24 : vector<8x32xf32>
    %26 = arith.mulf %25, %25 : vector<8x32xf32>
    %cst_11 = arith.constant dense<0.000000e+00> : vector<8xf32>
    %27 = vector.multi_reduction <add>, %26, %cst_11 [1] : vector<8x32xf32> to vector<8xf32>
    %28 = vector.shape_cast %27 : vector<8xf32> to vector<8x1xf32>
    %cst_12 = arith.constant 9.99999968E-21 : f32
    %29 = vector.broadcast %cst_12 : f32 to vector<8x1xf32>
    %30 = arith.maximumf %28, %29 : vector<8x1xf32>
    %31 = math.rsqrt %30 : vector<8x1xf32>
    %32 = vector.broadcast %31 : vector<8x1xf32> to vector<8x32xf32>
    %33 = arith.mulf %25, %32 : vector<8x32xf32>
    %c0_13 = arith.constant 0 : index
    %c0_14 = arith.constant 0 : index
    %34 = vector.load %arg6[%c0_13, %c0_14] : memref<8x32xf32, #tpu.memory_space<vmem>>, vector<8x32xf32>
    tpu.vector_store %arg6[%c0_13, %c0_14], %33 {strides = array<i32>} : memref<8x32xf32, #tpu.memory_space<vmem>>, vector<8x32xf32>,
    return
  }
  func.func @transform_0(%arg0: i32) -> (i32, i32) {
    %c0_i32 = arith.constant 0 : i32
    %c0_i32_0 = arith.constant 0 : i32
    return %arg0, %c0_i32 : i32, i32
  }
  func.func @transform_1(%arg0: i32) -> (i32, i32) {
    %c0_i32 = arith.constant 0 : i32
    %c0_i32_0 = arith.constant 0 : i32
    return %arg0, %c0_i32 : i32, i32
  }
  func.func @transform_2(%arg0: i32) -> (i32, i32) {
    %c0_i32 = arith.constant 0 : i32
    %c0_i32_0 = arith.constant 0 : i32
    %c0_i32_1 = arith.constant 0 : i32
    return %c0_i32, %c0_i32_0 : i32, i32
  }
  func.func @transform_3(%arg0: i32) -> (i32, i32) {
    %c0_i32 = arith.constant 0 : i32
    %c0_i32_0 = arith.constant 0 : i32
    %c0_i32_1 = arith.constant 0 : i32
    return %c0_i32, %c0_i32_0 : i32, i32
  }
  func.func @transform_4(%arg0: i32) -> (i32, i32) {
    %c0_i32 = arith.constant 0 : i32
    %c0_i32_0 = arith.constant 0 : i32
    %c0_i32_1 = arith.constant 0 : i32
    return %c0_i32, %c0_i32_0 : i32, i32
  }
  func.func @transform_5(%arg0: i32) -> (i32, i32) {
    %c0_i32 = arith.constant 0 : i32
    %c0_i32_0 = arith.constant 0 : i32
    return %arg0, %c0_i32 : i32, i32
  }
}

</mosaic_0001>

<llo_original>
// kernel: tpu_custom_call.1
$region0: #{tpu_custom_call.1}
  #allocation0 [shape = 'u32[]', space=smem, size = 0x4, offset = 0x4, fixed_abs, tag = 'smem constant byte address 0x4 - core index']
  #allocation1 [shape = 'u32[144,128]{1,0:T(1,128)}', space=vmem, size = 0x12000, scoped, tag = 'internal scratch']
  %s0 = inlined_call_operand.hbm [shape: f32[16,32], index: 0, kind: input, shape index: {}]
  %s1 = inlined_call_operand.vmem [shape: s32[16,2], index: 1, kind: input, shape index: {}]
  %s2 = inlined_call_operand.vmem [shape: f32[24,32], index: 2, kind: input, shape index: {}]
  %s3 = inlined_call_operand.hbm [shape: f32[32,32], index: 3, kind: input, shape index: {}]
  %s4 = inlined_call_operand.vmem [shape: f32[1,32], index: 4, kind: input, shape index: {}]
  %s5 = inlined_call_operand.hbm [shape: f32[16,32], index: 5, kind: output, shape index: {}]
  %s6 = sld [smem:[#allocation0]]
  $region61: #{tpu_custom_call.1} parent=0
    _
  %s8 = ssub.s32 1, %s6
  %s9 = scalar_select 0, %s8, %s6
  $region1: #{tpu_custom_call.1} parent=0
    #allocation2 [shape = 'u8[8192]{0}', space=vmem, size = 0x2000, scoped, tag = 'input window, operand 0']
    #allocation3 [shape = 's32[2]{0}', space=sflag, size = 0x8, scoped, tag = 'scoped memory for tpu_custom_call.1']
    #allocation4 [shape = 's32[2]{0}', space=sflag, size = 0x8, scoped, tag = 'scoped memory for tpu_custom_call.1']
    #allocation5 [shape = 'u8[16384]{0}', space=vmem, size = 0x4000, scoped, tag = 'input window, operand 3, single buffered']
    #allocation6 [shape = 's32[1]{0}', space=sflag, size = 0x4, scoped, tag = 'scoped memory for tpu_custom_call.1']
    #allocation7 [shape = 'u8[8192]{0}', space=vmem, size = 0x2000, scoped, tag = 'output window, operand 0']
    %10 = vsyncpa [#allocation3], 0
    %s11 = scalar_lea.sflag [#allocation3], 1
    %12 = vsyncpa %s11, 0
    %13 = vsyncpa [#allocation6], 0
    %14 = vsyncpa [#allocation4], 0
    %s15 = scalar_lea.sflag [#allocation4], 1
    %16 = vsyncpa %s15, 0
    loop: start=0, step=1, limit=4
    $region2: #{tpu_custom_call.1} parent=1 // loop_pre_header
      _
    $region3: #{tpu_custom_call.1} parent=1 // loop_header
      %s18 = sphi 0, %s22
      %p19 = scmp.ge.s32.totalorder %s18, 4
      %s28 = sphi 0, %s30
      %s31 = sphi 0, %s28
      %s32 = sphi 0, %s31
      %s48 = sphi 0, %s32
      %s54 = sphi 0, %s56
      %s57 = sphi 0, %s54
      %s58 = sphi 0, %s57
      %s74 = sphi 0, %s58
      %s78 = sphi 0, %s78
      %s80 = sphi 0, %s78
      %s81 = sphi 0, %s80
      %s95 = sphi 0, %s81
      %s99 = sphi 0, %s99
      %s101 = sphi 0, %s99
      %s102 = sphi 0, %s101
      %s116 = sphi 0, %s102
      %s120 = sphi 0, %s120
      %s122 = sphi 0, %s120
      %s123 = sphi 0, %s122
      %s137 = sphi 0, %s123
      %s143 = sphi 0, %s145
      %s146 = sphi 0, %s143
      %s147 = sphi 0, %s146
      %s163 = sphi 0, %s147
    $region4: #{tpu_custom_call.1} parent=1 // loop_header_branch
      %21 = sbr.rel (%p19) target = $region8
    $region5: #{tpu_custom_call.1} parent=1 // loop_body
      %s23 = ssub.s32 %s18, 1
      %s24 = ssub.s32 %s18, 2
      %s25 = sadd.s32 %s18, 1
      %s26 = ssub.s32 %s18, %s25
      %p27 = scmp.eq.s32.totalorder %s26, 0
      %s29 = sadd.s32 %s28, 1
      %s30 = scalar_select %p27, %s28, %s29
      %p33 = pneg %p27
      %p34 = scmp.eq.s32.totalorder %s18, 1
      %p35 = por %p33, %p34
      %p36 = scmp.ne.s32.totalorder %s28, %s31
      %p37 = scmp.eq.s32.totalorder %s18, 0
      %p38 = por %p36, %p37
      %p39 = scmp.ne.s32.totalorder %s28, %s31
      %p40 = scmp.eq.s32.totalorder %s23, 1
      %p41 = por %p39, %p40
      %p42 = scmp.ne.s32.totalorder %s31, %s32
      %p43 = scmp.eq.s32.totalorder %s23, 0
      %p44 = por %p42, %p43
      %p45 = scmp.ne.s32.totalorder %s31, %s32
      %p46 = scmp.eq.s32.totalorder %s24, 1
      %p47 = por %p45, %p46
      %p49 = scmp.ne.s32.totalorder %s32, %s48
      %p50 = scmp.eq.s32.totalorder %s24, 0
      %p51 = por %p49, %p50
      %s52 = ssub.s32 %s18, %s25
      %p53 = scmp.eq.s32.totalorder %s52, 0
      %s55 = sadd.s32 %s54, 1
      %s56 = scalar_select %p53, %s54, %s55
      %p59 = pneg %p53
      %p60 = scmp.eq.s32.totalorder %s18, 1
      %p61 = por %p59, %p60
      %p62 = scmp.ne.s32.totalorder %s54, %s57
      %p63 = scmp.eq.s32.totalorder %s18, 0
      %p64 = por %p62, %p63
      %p65 = scmp.ne.s32.totalorder %s54, %s57
      %p66 = scmp.eq.s32.totalorder %s23, 1
      %p67 = por %p65, %p66
      %p68 = scmp.ne.s32.totalorder %s57, %s58
      %p69 = scmp.eq.s32.totalorder %s23, 0
      %p70 = por %p68, %p69
      %p71 = scmp.ne.s32.totalorder %s57, %s58
      %p72 = scmp.eq.s32.totalorder %s24, 1
      %p73 = por %p71, %p72
      %p75 = scmp.ne.s32.totalorder %s58, %s74
      %p76 = scmp.eq.s32.totalorder %s24, 0
      %p77 = por %p75, %p76
      %s79 = sadd.s32 %s78, 1
      %p82 = scmp.eq.s32.totalorder %s18, 1
      %p83 = scmp.ne.s32.totalorder %s78, %s80
      %p84 = scmp.eq.s32.totalorder %s18, 0
      %p85 = por %p83, %p84
      %p86 = scmp.ne.s32.totalorder %s78, %s80
      %p87 = scmp.eq.s32.totalorder %s23, 1
      %p88 = por %p86, %p87
      %p89 = scmp.ne.s32.totalorder %s80, %s81
      %p90 = scmp.eq.s32.totalorder %s23, 0
      %p91 = por %p89, %p90
      %p92 = scmp.ne.s32.totalorder %s80, %s81
      %p93 = scmp.eq.s32.totalorder %s24, 1
      %p94 = por %p92, %p93
      %p96 = scmp.ne.s32.totalorder %s81, %s95
      %p97 = scmp.eq.s32.totalorder %s24, 0
      %p98 = por %p96, %p97
      %s100 = sadd.s32 %s99, 1
      %p103 = scmp.eq.s32.totalorder %s18, 1
      %p104 = scmp.ne.s32.totalorder %s99, %s101
      %p105 = scmp.eq.s32.totalorder %s18, 0
      %p106 = por %p104, %p105
      %p107 = scmp.ne.s32.totalorder %s99, %s101
      %p108 = scmp.eq.s32.totalorder %s23, 1
      %p109 = por %p107, %p108
      %p110 = scmp.ne.s32.totalorder %s101, %s102
      %p111 = scmp.eq.s32.totalorder %s23, 0
      %p112 = por %p110, %p111
      %p113 = scmp.ne.s32.totalorder %s101, %s102
      %p114 = scmp.eq.s32.totalorder %s24, 1
      %p115 = por %p113, %p114
      %p117 = scmp.ne.s32.totalorder %s102, %s116
      %p118 = scmp.eq.s32.totalorder %s24, 0
      %p119 = por %p117, %p118
      %s121 = sadd.s32 %s120, 1
      %p124 = scmp.eq.s32.totalorder %s18, 1
      %p125 = scmp.ne.s32.totalorder %s120, %s122
      %p126 = scmp.eq.s32.totalorder %s18, 0
      %p127 = por %p125, %p126
      %p128 = scmp.ne.s32.totalorder %s120, %s122
      %p129 = scmp.eq.s32.totalorder %s23, 1
      %p130 = por %p128, %p129
      %p131 = scmp.ne.s32.totalorder %s122, %s123
      %p132 = scmp.eq.s32.totalorder %s23, 0
      %p133 = por %p131, %p132
      %p134 = scmp.ne.s32.totalorder %s122, %s123
      %p135 = scmp.eq.s32.totalorder %s24, 1
      %p136 = por %p134, %p135
      %p138 = scmp.ne.s32.totalorder %s123, %s137
      %p139 = scmp.eq.s32.totalorder %s24, 0
      %p140 = por %p138, %p139
      %s141 = ssub.s32 %s18, %s25
      %p142 = scmp.eq.s32.totalorder %s141, 0
      %s144 = sadd.s32 %s143, 1
      %s145 = scalar_select %p142, %s143, %s144
      %p148 = pneg %p142
      %p149 = scmp.eq.s32.totalorder %s18, 1
      %p150 = por %p148, %p149
      %p151 = scmp.ne.s32.totalorder %s143, %s146
      %p152 = scmp.eq.s32.totalorder %s18, 0
      %p153 = por %p151, %p152
      %p154 = scmp.ne.s32.totalorder %s143, %s146
      %p155 = scmp.eq.s32.totalorder %s23, 1
      %p156 = por %p154, %p155
      %p157 = scmp.ne.s32.totalorder %s146, %s147
      %p158 = scmp.eq.s32.totalorder %s23, 0
      %p159 = por %p157, %p158
      %p160 = scmp.ne.s32.totalorder %s146, %s147
      %p161 = scmp.eq.s32.totalorder %s24, 1
      %p162 = por %p160, %p161
      %p164 = scmp.ne.s32.totalorder %s147, %s163
      %p165 = scmp.eq.s32.totalorder %s24, 0
      %p166 = por %p164, %p165
      %p167 = scmp.le.s32.totalorder 1, %s18
      %p168 = scmp.lt.s32.totalorder %s18, 3
      %p169 = pnand %p167, %p168
      %p170 = pneg %p169
      // Predicated region
      $region9: #{tpu_custom_call.1} parent=5 // pred_check
        _
      $region10: #{tpu_custom_call.1} parent=5 // pred_check_branch
        %172 = sbr.rel (%p169) target = $region12
      $region11: #{tpu_custom_call.1} parent=5 // pred_region
        %s173 = ssub.s32 %s18, 1
        // Predicated region
        $region13: #{tpu_custom_call.1} parent=11 // pred_check
          %p174 = pneg %p91
        $region14: #{tpu_custom_call.1} parent=11 // pred_check_branch
          %176 = sbr.rel (%p174) target = $region16
        $region15: #{tpu_custom_call.1} parent=11 // pred_region
          _
        $region16: #{tpu_custom_call.1} parent=11 // pred_fallthru
          _
        // Predicated region
        $region17: #{tpu_custom_call.1} parent=11 // pred_check
          %p177 = pneg %p112
        $region18: #{tpu_custom_call.1} parent=11 // pred_check_branch
          %179 = sbr.rel (%p177) target = $region20
        $region19: #{tpu_custom_call.1} parent=11 // pred_region
          %s181 = ssub.s32 512, 512
          %182 = vsyncadd [#allocation6], %s181
          %s183 = sshll.u32 [#allocation5], 4
          %s184 = int_to_ptr.vmem [resolvable:$true] %s183
          %189 = dma.hbm_to_vmem [thread:$0]  %s3, 512, %s184, [#allocation6], 128, 128, 8
        $region20: #{tpu_custom_call.1} parent=11 // pred_fallthru
          _
        // Predicated region
        $region21: #{tpu_custom_call.1} parent=11 // pred_check
          %p190 = pneg %p133
        $region22: #{tpu_custom_call.1} parent=11 // pred_check_branch
          %192 = sbr.rel (%p190) target = $region24
        $region23: #{tpu_custom_call.1} parent=11 // pred_region
          _
        $region24: #{tpu_custom_call.1} parent=11 // pred_fallthru
          _
      $region12: #{tpu_custom_call.1} parent=5 // pred_fallthru
        _
      %p193 = scmp.lt.s32.totalorder %s18, 2
      // Predicated region
      $region25: #{tpu_custom_call.1} parent=5 // pred_check
        %p194 = pneg %p193
      $region26: #{tpu_custom_call.1} parent=5 // pred_check_branch
        %196 = sbr.rel (%p194) target = $region28
      $region27: #{tpu_custom_call.1} parent=5 // pred_region
        // Predicated region
        $region29: #{tpu_custom_call.1} parent=27 // pred_check
          %p197 = pneg %p38
        $region30: #{tpu_custom_call.1} parent=27 // pred_check_branch
          %199 = sbr.rel (%p197) target = $region32
        $region31: #{tpu_custom_call.1} parent=27 // pred_region
          %s200 = sand.u32 %s28, 1
          %s201 = scalar_lea.sflag [#allocation3], %s200
          %s202 = sand.u32 %s28, 1
          %s203 = smul.addr %s202, 8
          %s204 = scalar_lea.vmem [#allocation2], %s203
          %s206 = ssub.s32 128, 128
          %207 = vsyncadd %s201, %s206
          %s208 = smul.addr %s18, 128
          %s209 = scalar_lea.hbm %s0, %s208
          %s211 = sshll.u32 %s204, 4
          %s212 = int_to_ptr.vmem [resolvable:$true] %s211
          %214 = dma.hbm_to_vmem [thread:$0]  %s209, 128, %s212, %s201
        $region32: #{tpu_custom_call.1} parent=27 // pred_fallthru
          _
        // Predicated region
        $region33: #{tpu_custom_call.1} parent=27 // pred_check
          %p215 = pneg %p64
        $region34: #{tpu_custom_call.1} parent=27 // pred_check_branch
          %217 = sbr.rel (%p215) target = $region36
        $region35: #{tpu_custom_call.1} parent=27 // pred_region
          %p218 = scmp.lt.s32.totalorder %s18, 1
          %s219 = scalar_select %p218, %s18, 1
          %s220 = smul.addr %s219, 8
          %s221 = scalar_lea.vmem %s1, %s220
        $region36: #{tpu_custom_call.1} parent=27 // pred_fallthru
          _
      $region28: #{tpu_custom_call.1} parent=5 // pred_fallthru
        _
      %p222 = scmp.le.s32.totalorder 1, %s18
      %p223 = scmp.lt.s32.totalorder %s18, 3
      %p224 = pnand %p222, %p223
      %p225 = pneg %p224
      // Predicated region
      $region37: #{tpu_custom_call.1} parent=5 // pred_check
        _
      $region38: #{tpu_custom_call.1} parent=5 // pred_check_branch
        %227 = sbr.rel (%p224) target = $region40
      $region39: #{tpu_custom_call.1} parent=5 // pred_region
        %s228 = ssub.s32 %s18, 1
        %s229 = sand.u32 %s31, 1
        %s230 = scalar_lea.sflag [#allocation3], %s229
        %s231 = sand.u32 %s31, 1
        %s232 = smul.addr %s231, 8
        %s233 = scalar_lea.vmem [#allocation2], %s232
        // Predicated region
        $region41: #{tpu_custom_call.1} parent=39 // pred_check
          %p234 = pneg %p44
        $region42: #{tpu_custom_call.1} parent=39 // pred_check_branch
          %236 = sbr.rel (%p234) target = $region44
        $region43: #{tpu_custom_call.1} parent=39 // pred_region
          %237 = dma.done %s230, 128
        $region44: #{tpu_custom_call.1} parent=39 // pred_fallthru
          _
        // Predicated region
        $region45: #{tpu_custom_call.1} parent=39 // pred_check
          %p238 = pneg %p112
        $region46: #{tpu_custom_call.1} parent=39 // pred_check_branch
          %240 = sbr.rel (%p238) target = $region48
        $region47: #{tpu_custom_call.1} parent=39 // pred_region
          %241 = dma.done [#allocation6], 512
        $region48: #{tpu_custom_call.1} parent=39 // pred_fallthru
          _
        %s242 = sand.u32 %s31, 1
        %s243 = scalar_lea.sflag [#allocation3], %s242
        %s244 = sand.u32 %s31, 1
        %s245 = smul.addr %s244, 8
        %s246 = scalar_lea.vmem [#allocation2], %s245
        %p247 = pneg %p44
        %p248 = pneg %p41
        %p249 = scmp.lt.s32.totalorder %s23, 1
        %s250 = scalar_select %p249, %s23, 1
        %s251 = smul.addr %s250, 8
        %s252 = scalar_lea.vmem %s1, %s251
        %p253 = pneg %p70
        %p254 = pneg %p67
        %p255 = pneg %p91
        %p256 = pneg %p88
        %p257 = pneg %p112
        %p258 = pneg %p109
        %p259 = pneg %p133
        %p260 = pneg %p130
        %p261 = pneg %p159
        %p262 = pneg %p156
        %s263 = sand.u32 %s146, 1
        %s264 = scalar_lea.sflag [#allocation4], %s263
        %s265 = sand.u32 %s146, 1
        %s266 = smul.addr %s265, 8
        %s267 = scalar_lea.vmem [#allocation7], %s266
        %p268 = scmp.lt.s32.totalorder %s23, 1
        %s269 = scalar_select %p268, %s23, 1
        %s270 = smul.addr %s269, 8
        %s271 = scalar_lea.vmem %s1, %s270
        %v272 = vld [vmem:[%s233] sm:$0xff]
        %v273 = vld [vmem:[%s271] sm:$0xff]
        %v274 = vld [vmem:[%s2] sm:$0xff]
        %v275 = vld [vmem:[%s2 + $0x8] sm:$0xff]
        %v276 = vld [vmem:[%s2 + $0x10] sm:$0xff]
        %v277 = vlaneseq
        %v278 = vand.u32 %v277, 127
        %279 = vset.pattern.permute.xlu0 0
        %280 = vperm.xlu0 %279, %v273
        %v281 = vpop.permute.xlu0 %280
        %vm282 = vcmp.eq.s32.totalorder %v281, %v278
        %v283 = vsel %vm282, 1, 0
        %v284 = vcvt.s32.f32 %v283
        %v285 = vadd.s32 %v273, 4
        %286 = vset.pattern.permute.xlu0 1
        %287 = vperm.xlu0 %286, %v285
        %v288 = vpop.permute.xlu0 %287
        %vm289 = vcmp.eq.s32.totalorder %v288, %v278
        %v290 = vsel %vm289, 1, 0
        %v291 = vcvt.s32.f32 %v290
        %v292 = vadd.f32 %v284, %v291
        %vm293 = vcmask 195584
        %v295 = vsel %vm293, %v292, 0
        %297 = vmatprep.subr.mxu0 0.0
        %298 = vmatpush1.msra.mxu0 %v274
        %299 = vmatprep.subr.mxu0 0.0
        %300 = vmatpush1.msra.mxu0 %v275
        %301 = vmatprep.subr.mxu0 0.0
        %302 = vmatpush1.msra.mxu0 %v276
        %303 = vmatprep.subr.mxu0 0.0
        %304 = vmatpush1.msra.mxu0 0.0
        %305 = vmatprep.subr.mxu0 0.0
        %306 = vmatpush1.msra.mxu0 0.0
        %307 = vmatprep.subr.mxu0 0.0
        %308 = vmatpush1.msra.mxu0 0.0
        %309 = vmatprep.subr.mxu0 0.0
        %310 = vmatpush1.msra.mxu0 0.0
        %311 = vmatprep.subr.mxu0 0.0
        %312 = vmatpush1.msra.mxu0 0.0
        %313 = vmatprep.subr.mxu0 0.0
        %314 = vmatpush1.msra.mxu0 0.0
        %315 = vmatprep.subr.mxu0 0.0
        %316 = vmatpush1.msra.mxu0 0.0
        %317 = vmatprep.subr.mxu0 0.0
        %318 = vmatpush1.msra.mxu0 0.0
        %319 = vmatprep.subr.mxu0 0.0
        %320 = vmatpush1.msra.mxu0 0.0
        %321 = vmatprep.subr.mxu0 0.0
        %322 = vmatpush1.msra.mxu0 0.0
        %323 = vmatprep.subr.mxu0 0.0
        %324 = vmatpush1.msra.mxu0 0.0
        %325 = vmatprep.subr.mxu0 0.0
        %326 = vmatpush1.msra.mxu0 0.0
        %327 = vmatprep.subr.mxu0 0.0
        %328 = vmatpush1.msra.mxu0 0.0
        %329 = vmatprep.subr.mxu0 0.0
        %330 = vmatpush1.msra.mxu0 0.0
        %331 = vmatprep.subr.mxu0 0.0
        %332 = vmatpush1.msra.mxu0 0.0
        %333 = vmatprep.subr.mxu0 0.0
        %334 = vmatpush1.msra.mxu0 0.0
        %335 = vmatprep.subr.mxu0 0.0
        %336 = vmatpush1.msra.mxu0 0.0
        %337 = vmatprep.subr.mxu0 0.0
        %338 = vmatpush1.msra.mxu0 0.0
        %339 = vmatprep.subr.mxu0 0.0
        %340 = vmatpush1.msra.mxu0 0.0
        %341 = vmatprep.subr.mxu0 0.0
        %342 = vmatpush1.msra.mxu0 0.0
        %343 = vmatprep.subr.mxu0 0.0
        %344 = vmatpush1.msra.mxu0 0.0
        %345 = vmatprep.subr.mxu0 0.0
        %346 = vmatpush1.msra.mxu0 0.0
        %347 = vmatprep.subr.mxu0 0.0
        %348 = vmatpush1.msra.mxu0 0.0
        %349 = vmatprep.subr.mxu0 0.0
        %350 = vmatpush1.msra.mxu0 0.0
        %351 = vmatprep.subr.mxu0 0.0
        %352 = vmatpush1.msra.mxu0 0.0
        %353 = vmatprep.subr.mxu0 0.0
        %354 = vmatpush1.msra.mxu0 0.0
        %355 = vmatprep.subr.mxu0 0.0
        %356 = vmatpush1.msra.mxu0 0.0
        %357 = vmatprep.subr.mxu0 0.0
        %358 = vmatpush1.msra.mxu0 0.0
        %359 = vmatprep.subr.mxu0 0.0
        %360 = vmatpush1.msra.mxu0 0.0
        %361 = vmatprep.mubr.f32.mxu0 0.0
        %362 = vmatmul.mubr.f32.gmra.mrb[0].mxu0 %v295
        %v363 = vpop.f32.mrb[0].mxu0
        %v364 = vadd.f32 0.0, %v363
        %v365 = vpop.f32.mrb[0].mxu0
        %366 = vdwg.mxu0
        %v367 = vmul.f32 %v272, %v364
        %v368 = vld [vmem:[#allocation5] sm:$0xff]
        %v369 = vld [vmem:[#allocation5 + $0x8] sm:$0xff]
        %v370 = vld [vmem:[#allocation5 + $0x10] sm:$0xff]
        %v371 = vld [vmem:[#allocation5 + $0x18] sm:$0xff]
        %v372 = vld [vmem:[%s4] sm:$0x1]
        %v374 = vlaneseq
        %v375 = vshrl.u32 %v374, 7
        %v376 = vsub.s32 0, %v375
        %v377 = vrot.slane %v372, %v376
        %vm379 = vcmask 261120
        %v381 = vsel %vm379, %v367, 0
        %383 = vmatprep.subr.mxu0 0.0
        %384 = vmatpush1.msra.mxu0 %v368
        %385 = vmatprep.subr.mxu0 0.0
        %386 = vmatpush1.msra.mxu0 %v369
        %387 = vmatprep.subr.mxu0 0.0
        %388 = vmatpush1.msra.mxu0 %v370
        %389 = vmatprep.subr.mxu0 0.0
        %390 = vmatpush1.msra.mxu0 %v371
        %391 = vmatprep.subr.mxu0 0.0
        %392 = vmatpush1.msra.mxu0 0.0
        %393 = vmatprep.subr.mxu0 0.0
        %394 = vmatpush1.msra.mxu0 0.0
        %395 = vmatprep.subr.mxu0 0.0
        %396 = vmatpush1.msra.mxu0 0.0
        %397 = vmatprep.subr.mxu0 0.0
        %398 = vmatpush1.msra.mxu0 0.0
        %399 = vmatprep.subr.mxu0 0.0
        %400 = vmatpush1.msra.mxu0 0.0
        %401 = vmatprep.subr.mxu0 0.0
        %402 = vmatpush1.msra.mxu0 0.0
        %403 = vmatprep.subr.mxu0 0.0
        %404 = vmatpush1.msra.mxu0 0.0
        %405 = vmatprep.subr.mxu0 0.0
        %406 = vmatpush1.msra.mxu0 0.0
        %407 = vmatprep.subr.mxu0 0.0
        %408 = vmatpush1.msra.mxu0 0.0
        %409 = vmatprep.subr.mxu0 0.0
        %410 = vmatpush1.msra.mxu0 0.0
        %411 = vmatprep.subr.mxu0 0.0
        %412 = vmatpush1.msra.mxu0 0.0
        %413 = vmatprep.subr.mxu0 0.0
        %414 = vmatpush1.msra.mxu0 0.0
        %415 = vmatprep.subr.mxu0 0.0
        %416 = vmatpush1.msra.mxu0 0.0
        %417 = vmatprep.subr.mxu0 0.0
        %418 = vmatpush1.msra.mxu0 0.0
        %419 = vmatprep.subr.mxu0 0.0
        %420 = vmatpush1.msra.mxu0 0.0
        %421 = vmatprep.subr.mxu0 0.0
        %422 = vmatpush1.msra.mxu0 0.0
        %423 = vmatprep.subr.mxu0 0.0
        %424 = vmatpush1.msra.mxu0 0.0
        %425 = vmatprep.subr.mxu0 0.0
        %426 = vmatpush1.msra.mxu0 0.0
        %427 = vmatprep.subr.mxu0 0.0
        %428 = vmatpush1.msra.mxu0 0.0
        %429 = vmatprep.subr.mxu0 0.0
        %430 = vmatpush1.msra.mxu0 0.0
        %431 = vmatprep.subr.mxu0 0.0
        %432 = vmatpush1.msra.mxu0 0.0
        %433 = vmatprep.subr.mxu0 0.0
        %434 = vmatpush1.msra.mxu0 0.0
        %435 = vmatprep.subr.mxu0 0.0
        %436 = vmatpush1.msra.mxu0 0.0
        %437 = vmatprep.subr.mxu0 0.0
        %438 = vmatpush1.msra.mxu0 0.0
        %439 = vmatprep.subr.mxu0 0.0
        %440 = vmatpush1.msra.mxu0 0.0
        %441 = vmatprep.subr.mxu0 0.0
        %442 = vmatpush1.msra.mxu0 0.0
        %443 = vmatprep.subr.mxu0 0.0
        %444 = vmatpush1.msra.mxu0 0.0
        %445 = vmatprep.subr.mxu0 0.0
        %446 = vmatpush1.msra.mxu0 0.0
        %447 = vmatprep.mubr.f32.mxu0 0.0
        %448 = vmatmul.mubr.f32.gmra.mrb[0].mxu0 %v381
        %v449 = vpop.f32.mrb[0].mxu0
        %v450 = vadd.f32 %v377, %v449
        %v451 = vpop.f32.mrb[0].mxu0
        %452 = vdwg.mxu0
        %v453 = vmax.f32 %v450, 0.0
        %v454 = vmul.f32 %v453, %v453
        %v455 = vsel %vm379, %v454, 0.0
        %456 = vadd.xlane.f32.xlu0 %v455
        %v457 = vpop.xlane.xlu0 %456
        %v458 = vmax.f32 %v457, 1e-20
        %v459 = vrsqrt.pop %v458
        %v460 = vmul.f32 %v453, %v459
        %461 = vst.msk [vmem:[%s267] sm:$0xff] %vm379, %v460
        %s462 = sand.u32 %s146, 1
        %s463 = scalar_lea.sflag [#allocation4], %s462
        %s464 = sand.u32 %s146, 1
        %s465 = smul.addr %s464, 8
        %s466 = scalar_lea.vmem [#allocation7], %s465
        // Predicated region
        $region49: #{tpu_custom_call.1} parent=39 // pred_check
          %p467 = pneg %p156
        $region50: #{tpu_custom_call.1} parent=39 // pred_check_branch
          %469 = sbr.rel (%p467) target = $region52
        $region51: #{tpu_custom_call.1} parent=39 // pred_region
          %s471 = ssub.s32 128, 128
          %472 = vsyncadd %s463, %s471
          %s473 = smul.addr %s23, 128
          %s474 = scalar_lea.hbm %s5, %s473
          %s476 = sshll.u32 %s466, 4
          %s477 = int_to_ptr.vmem [resolvable:$true] %s476
          %479 = dma.vmem_to_hbm [thread:$0]  %s477, 128, %s474, %s463
        $region52: #{tpu_custom_call.1} parent=39 // pred_fallthru
          _
      $region40: #{tpu_custom_call.1} parent=5 // pred_fallthru
        _
      %p480 = scmp.le.s32.totalorder 2, %s18
      // Predicated region
      $region53: #{tpu_custom_call.1} parent=5 // pred_check
        %p481 = pneg %p480
      $region54: #{tpu_custom_call.1} parent=5 // pred_check_branch
        %483 = sbr.rel (%p481) target = $region56
      $region55: #{tpu_custom_call.1} parent=5 // pred_region
        %s484 = ssub.s32 %s18, 2
        // Predicated region
        $region57: #{tpu_custom_call.1} parent=55 // pred_check
          %p485 = pneg %p162
        $region58: #{tpu_custom_call.1} parent=55 // pred_check_branch
          %487 = sbr.rel (%p485) target = $region60
        $region59: #{tpu_custom_call.1} parent=55 // pred_region
          %s488 = sand.u32 %s147, 1
          %s489 = scalar_lea.sflag [#allocation4], %s488
          %s490 = sand.u32 %s147, 1
          %s491 = smul.addr %s490, 8
          %s492 = scalar_lea.vmem [#allocation7], %s491
          %493 = dma.done %s489, 128
        $region60: #{tpu_custom_call.1} parent=55 // pred_fallthru
          _
      $region56: #{tpu_custom_call.1} parent=5 // pred_fallthru
        _
    $region6: #{tpu_custom_call.1} parent=1 // loop_footer
      %s22 = sadd.s32 1, %s18
    $region7: #{tpu_custom_call.1} parent=1 // loop_footer_branch
      %17 = sbr.rel target = $region3
    $region8: #{tpu_custom_call.1} parent=1 // loop_exit
      _
    %494 = vsyncpa [#allocation3], 1
    %s495 = scalar_lea.sflag [#allocation3], 1
    %496 = vsyncpa %s495, 1
    %497 = vsyncpa [#allocation6], 1
    %498 = vsyncpa [#allocation4], 1
    %s499 = scalar_lea.sflag [#allocation4], 1
    %500 = vsyncpa %s499, 1

</llo_original>
